<compile_context>
chip_gen: v6e
topology: v6e:2x2x1
jax: 0.10.0
libtpu: 0.0.40
codegen_flags: <defaults>
</compile_context>

<pallas_src>
import jax
import jax.numpy as jnp
from jax.experimental import pallas as pl
from jax.experimental.pallas import tpu as pltpu

IN_FEATURES = 500
HIDDEN = 500
OUT_FEATURES = 1
H_PAD = 512  # hidden dim padded to a lane-friendly multiple of 128 (weights only)


def mlp_kernel(x_ref, w1_ref, b1_ref, w2_ref, b2_ref, o_ref):
    # x_ref : [TB, 500]   (unpadded; Mosaic masks the K remainder in the matmul)
    # w1_ref: [500, 512]  (fc1 weight, transposed + N-padded with zeros)
    # b1_ref: [1, 512]    (fc1 bias, zero-padded)
    # w2_ref: [512, 1]    (fc2 weight, transposed + K-padded with zeros)
    # b2_ref: [1, 1]      (fc2 bias scalar, SMEM)
    # o_ref : [TB, 1]
    h = jnp.tanh(
        jnp.dot(x_ref[...], w1_ref[...], preferred_element_type=jnp.float32)
        + b1_ref[...]
    )
    logit = jnp.dot(h, w2_ref[...], preferred_element_type=jnp.float32) + b2_ref[0, 0]
    o_ref[...] = jax.nn.sigmoid(logit)


def domain_classifier(x, fc1_weight, fc1_bias, fc2_weight, fc2_bias, alpha=10):
    """Forward pass of DomainClassifier.

    x:          [B, 500] float32
    fc1_weight: [500, 500] float32 (PyTorch layout: out x in)
    fc1_bias:   [500]      float32
    fc2_weight: [1, 500]   float32
    fc2_bias:   [1]        float32
    alpha: unused in forward (GradReverse only affects the backward pass).
    returns     [B, 1]     float32
    """
    del alpha  # identity in forward
    B, K = x.shape
    assert K == IN_FEATURES

    # Tiny, one-time host-side weight/bias padding (x itself is NOT copied/padded).
    w1_p = jnp.zeros((K, H_PAD), jnp.float32).at[:, :HIDDEN].set(fc1_weight.T)
    b1_p = jnp.zeros((1, H_PAD), jnp.float32).at[0, :HIDDEN].set(fc1_bias)
    w2_p = jnp.zeros((H_PAD, OUT_FEATURES), jnp.float32).at[:HIDDEN, :].set(
        fc2_weight.T
    )
    b2_s = fc2_bias.reshape(1, 1).astype(jnp.float32)

    # Batch tiling: TB <= 512 keeps per-step VMEM well under the v5e 16 MiB
    # scoped default (and v7x's 32 MiB) while restoring DMA/compute pipelining.
    TB = B if B <= 512 else 512
    num_tiles = pl.cdiv(B, TB)

    out = pl.pallas_call(
        mlp_kernel,
        out_shape=jax.ShapeDtypeStruct((B, OUT_FEATURES), jnp.float32),
        grid_spec=pltpu.PrefetchScalarGridSpec(
            num_scalar_prefetch=0,
            grid=(num_tiles,),
            in_specs=[
                pl.BlockSpec((TB, K), lambda i: (i, 0)),        # x: streams per tile
                pl.BlockSpec((K, H_PAD), lambda i: (0, 0)),     # w1: resident
                pl.BlockSpec((1, H_PAD), lambda i: (0, 0)),     # b1: resident
                pl.BlockSpec((H_PAD, OUT_FEATURES), lambda i: (0, 0)),  # w2: resident
                pl.BlockSpec(memory_space=pltpu.MemorySpace.SMEM),      # b2 scalar
            ],
            out_specs=pl.BlockSpec((TB, OUT_FEATURES), lambda i: (i, 0)),
        ),
        compiler_params=pltpu.CompilerParams(
            dimension_semantics=("parallel",),  # shard batch tiles across TCs on v7x
        ),
    )(x, w1_p, b1_p, w2_p, b2_s)

    return out


if __name__ == "__main__":
    key = jax.random.PRNGKey(0)
    kx, kw1, kb1, kw2, kb2 = jax.random.split(key, 5)

    B = 8
    x = jax.random.normal(kx, (B, IN_FEATURES), dtype=jnp.float32)

    # Deterministic params mirroring nn.Linear's uniform(-1/sqrt(fan_in), 1/sqrt(fan_in)).
    bound1 = 1.0 / (IN_FEATURES ** 0.5)
    fc1_weight = jax.random.uniform(
        kw1, (HIDDEN, IN_FEATURES), minval=-bound1, maxval=bound1, dtype=jnp.float32
    )
    fc1_bias = jax.random.uniform(
        kb1, (HIDDEN,), minval=-bound1, maxval=bound1, dtype=jnp.float32
    )
    bound2 = 1.0 / (HIDDEN ** 0.5)
    fc2_weight = jax.random.uniform(
        kw2, (OUT_FEATURES, HIDDEN), minval=-bound2, maxval=bound2, dtype=jnp.float32
    )
    fc2_bias = jax.random.uniform(
        kb2, (OUT_FEATURES,), minval=-bound2, maxval=bound2, dtype=jnp.float32
    )

    out = domain_classifier(x, fc1_weight, fc1_bias, fc2_weight, fc2_bias)
    out = jax.block_until_ready(out)

    # Pure-JAX reference (GradReverse is identity in forward).
    h_ref = jnp.tanh(x @ fc1_weight.T + fc1_bias)
    ref = jax.nn.sigmoid(h_ref @ fc2_weight.T + fc2_bias)

    assert out.shape == (B, OUT_FEATURES)
    assert jnp.allclose(out, ref, atol=1e-4, rtol=1e-4)

    print("KERNEL_OK")
</pallas_src>

<mosaic_0001>
module attributes {stable_mosaic.version = 11 : i64} {
  func.func @mlp_kernel(%arg0: i32, %arg1: memref<8x500xf32, #tpu.memory_space<vmem>>, %arg2: memref<500x512xf32, #tpu.memory_space<vmem>>, %arg3: memref<1x512xf32, #tpu.memory_space<vmem>>, %arg4: memref<512x1xf32, #tpu.memory_space<vmem>>, %arg5: memref<1x1xf32, #tpu.memory_space<smem>>, %arg6: memref<8x1xf32, #tpu.memory_space<vmem>>) attributes {dimension_semantics = [#tpu.dimension_semantics<parallel>], iteration_bounds = array<i64: 1>, scalar_prefetch = 0 : i64, scratch_operands = 0 : i64, tpu.core_type = #tpu.core_type<tc>, window_params = [{transform_indices = @transform_0, window_bounds = array<i64: 8, 500>}, {pipeline_mode = #tpu.pipeline_mode<synchronous>, transform_indices = @transform_1, window_bounds = array<i64: 500, 512>}, {pipeline_mode = #tpu.pipeline_mode<synchronous>, transform_indices = @transform_2, window_bounds = array<i64: 1, 512>}, {pipeline_mode = #tpu.pipeline_mode<synchronous>, transform_indices = @transform_3, window_bounds = array<i64: 512, 1>}, {transform_indices = @transform_4, window_bounds = array<i64: 1, 1>}, {transform_indices = @transform_5, window_bounds = array<i64: 8, 1>}]} {
    %c0 = arith.constant 0 : index
    %c0_0 = arith.constant 0 : index
    %0 = vector.load %arg1[%c0, %c0_0] : memref<8x500xf32, #tpu.memory_space<vmem>>, vector<8x500xf32>
    %c0_1 = arith.constant 0 : index
    %c0_2 = arith.constant 0 : index
    %1 = vector.load %arg2[%c0_1, %c0_2] : memref<500x512xf32, #tpu.memory_space<vmem>>, vector<500x512xf32>
    %cst = arith.constant dense<0.000000e+00> : vector<8x512xf32>
    %2 = tpu.matmul %0, %1, %cst {dimension_numbers = #tpu.dot_dimension_numbers<[1], [0], [0], [1], [0, 0, 1, 1], [], []>} : vector<8x500xf32>, vector<500x512xf32>, vector<8x512xf32> -> vector<8x512xf32>
    %c0_3 = arith.constant 0 : index
    %c0_4 = arith.constant 0 : index
    %3 = vector.load %arg3[%c0_3, %c0_4] : memref<1x512xf32, #tpu.memory_space<vmem>>, vector<1x512xf32>
    %4 = vector.broadcast %3 : vector<1x512xf32> to vector<8x512xf32>
    %5 = arith.addf %2, %4 : vector<8x512xf32>
    %6 = math.tanh %5 : vector<8x512xf32>
    %c0_5 = arith.constant 0 : index
    %c0_6 = arith.constant 0 : index
    %7 = vector.load %arg4[%c0_5, %c0_6] : memref<512x1xf32, #tpu.memory_space<vmem>>, vector<512x1xf32>
    %cst_7 = arith.constant dense<0.000000e+00> : vector<8x1xf32>
    %8 = tpu.matmul %6, %7, %cst_7 {dimension_numbers = #tpu.dot_dimension_numbers<[1], [0], [0], [1], [0, 0, 1, 1], [], []>} : vector<8x512xf32>, vector<512x1xf32>, vector<8x1xf32> -> vector<8x1xf32>
    %c0_8 = arith.constant 0 : index
    %c0_9 = arith.constant 0 : index
    %9 = memref.load %arg5[%c0_8, %c0_9] : memref<1x1xf32, #tpu.memory_space<smem>>
    %10 = vector.broadcast %9 : f32 to vector<8x1xf32>
    %11 = arith.addf %8, %10 : vector<8x1xf32>
    %12 = arith.negf %11 : vector<8x1xf32>
    %13 = math.exp %12 : vector<8x1xf32>
    %cst_10 = arith.constant 1.000000e+00 : f32
    %14 = vector.broadcast %cst_10 : f32 to vector<8x1xf32>
    %15 = arith.addf %14, %13 : vector<8x1xf32>
    %16 = arith.divf %14, %15 : vector<8x1xf32>
    %c0_11 = arith.constant 0 : index
    %c0_12 = arith.constant 0 : index
    %17 = vector.load %arg6[%c0_11, %c0_12] : memref<8x1xf32, #tpu.memory_space<vmem>>, vector<8x1xf32>
    tpu.vector_store %arg6[%c0_11, %c0_12], %16 {strides = array<i32>} : memref<8x1xf32, #tpu.memory_space<vmem>>, vector<8x1xf32>,
    return
  }
  func.func @transform_0(%arg0: i32) -> (i32, i32) {
    %c0_i32 = arith.constant 0 : i32
    %c0_i32_0 = arith.constant 0 : i32
    return %arg0, %c0_i32 : i32, i32
  }
  func.func @transform_1(%arg0: i32) -> (i32, i32) {
    %c0_i32 = arith.constant 0 : i32
    %c0_i32_0 = arith.constant 0 : i32
    %c0_i32_1 = arith.constant 0 : i32
    return %c0_i32, %c0_i32_0 : i32, i32
  }
  func.func @transform_2(%arg0: i32) -> (i32, i32) {
    %c0_i32 = arith.constant 0 : i32
    %c0_i32_0 = arith.constant 0 : i32
    %c0_i32_1 = arith.constant 0 : i32
    return %c0_i32, %c0_i32_0 : i32, i32
  }
  func.func @transform_3(%arg0: i32) -> (i32, i32) {
    %c0_i32 = arith.constant 0 : i32
    %c0_i32_0 = arith.constant 0 : i32
    %c0_i32_1 = arith.constant 0 : i32
    return %c0_i32, %c0_i32_0 : i32, i32
  }
  func.func @transform_4(%arg0: i32) -> (i32, i32) {
    %c0_i32 = arith.constant 0 : i32
    %c0_i32_0 = arith.constant 0 : i32
    %c0_i32_1 = arith.constant 0 : i32
    return %c0_i32, %c0_i32_0 : i32, i32
  }
  func.func @transform_5(%arg0: i32) -> (i32, i32) {
    %c0_i32 = arith.constant 0 : i32
    %c0_i32_0 = arith.constant 0 : i32
    return %arg0, %c0_i32 : i32, i32
  }
}

</mosaic_0001>

<llo_original>
// kernel: tpu_custom_call.1
$region0: #{tpu_custom_call.1}
  #allocation0 [shape = 'u32[]', space=smem, size = 0x4, offset = 0x4, fixed_abs, tag = 'smem constant byte address 0x4 - core index']
  #allocation1 [shape = 'u32[144,128]{1,0:T(1,128)}', space=vmem, size = 0x12000, scoped, tag = 'internal scratch']
  #allocation2 [shape = 'f32[1,1]{1,0:T(1,128)S(6)}', space=smem, size = 0x200, scoped, tag = 'scoped memory for tpu_custom_call.1']
  %s0 = inlined_call_operand.vmem [shape: f32[8,500], index: 0, kind: input, shape index: {}]
  %s1 = inlined_call_operand.hbm [shape: f32[500,512], index: 1, kind: input, shape index: {}]
  %s2 = inlined_call_operand.vmem [shape: f32[1,512], index: 2, kind: input, shape index: {}]
  %s3 = inlined_call_operand.vmem [shape: f32[512,1], index: 3, kind: input, shape index: {}]
  %s4 = inlined_call_operand.<no memory space> [shape: f32[1,1], index: 4, kind: input, shape index: {}]
  %s5 = inlined_call_operand.vmem [shape: f32[8,1], index: 5, kind: output, shape index: {}]
  %s6 = sld [smem:[#allocation0]]
  $region34: #{tpu_custom_call.1} parent=0
    _
  %s8 = ssub.s32 1, %s6
  %s9 = scalar_select 0, %s8, %s6
  %10 = sst [smem:[#allocation2]] %s4
  $region1: #{tpu_custom_call.1} parent=0
    #allocation3 [shape = 'u8[1032192]{0}', space=vmem, size = 0xfc000, scoped, tag = 'input window, operand 1, single buffered']
    #allocation4 [shape = 's32[1]{0}', space=sflag, size = 0x4, scoped, tag = 'scoped memory for tpu_custom_call.1']
    %11 = vsyncpa [#allocation4], 0
    // Predicated region
    $region2: #{tpu_custom_call.1} parent=1 // pred_check
      _
    $region3: #{tpu_custom_call.1} parent=1 // pred_check_branch
      %13 = sbr.rel (0) target = $region5
    $region4: #{tpu_custom_call.1} parent=1 // pred_region
      _
    $region5: #{tpu_custom_call.1} parent=1 // pred_fallthru
      _
    // Predicated region
    $region6: #{tpu_custom_call.1} parent=1 // pred_check
      _
    $region7: #{tpu_custom_call.1} parent=1 // pred_check_branch
      %15 = sbr.rel (0) target = $region9
    $region8: #{tpu_custom_call.1} parent=1 // pred_region
      %s17 = ssub.s32 32256, 32256
      %18 = vsyncadd [#allocation4], %s17
      %s19 = sshll.u32 [#allocation3], 4
      %s20 = int_to_ptr.vmem [resolvable:$true] %s19
      %25 = dma.hbm_to_vmem [thread:$0]  %s1, 32256, %s20, [#allocation4], 512, 512, 32
    $region9: #{tpu_custom_call.1} parent=1 // pred_fallthru
      _
    // Predicated region
    $region10: #{tpu_custom_call.1} parent=1 // pred_check
      _
    $region11: #{tpu_custom_call.1} parent=1 // pred_check_branch
      %27 = sbr.rel (0) target = $region13
    $region12: #{tpu_custom_call.1} parent=1 // pred_region
      _
    $region13: #{tpu_custom_call.1} parent=1 // pred_fallthru
      _
    // Predicated region
    $region14: #{tpu_custom_call.1} parent=1 // pred_check
      _
    $region15: #{tpu_custom_call.1} parent=1 // pred_check_branch
      %29 = sbr.rel (0) target = $region17
    $region16: #{tpu_custom_call.1} parent=1 // pred_region
      _
    $region17: #{tpu_custom_call.1} parent=1 // pred_fallthru
      _
    // Predicated region
    $region18: #{tpu_custom_call.1} parent=1 // pred_check
      _
    $region19: #{tpu_custom_call.1} parent=1 // pred_check_branch
      %31 = sbr.rel (0) target = $region21
    $region20: #{tpu_custom_call.1} parent=1 // pred_region
      _
    $region21: #{tpu_custom_call.1} parent=1 // pred_fallthru
      _
    // Predicated region
    $region22: #{tpu_custom_call.1} parent=1 // pred_check
      _
    $region23: #{tpu_custom_call.1} parent=1 // pred_check_branch
      %33 = sbr.rel (0) target = $region25
    $region24: #{tpu_custom_call.1} parent=1 // pred_region
      %34 = dma.done [#allocation4], 32256
    $region25: #{tpu_custom_call.1} parent=1 // pred_fallthru
      _
    %v35 = vld [vmem:[%s0] sm:$0xff]
    %v36 = vld [vmem:[%s0 + $0x8] sm:$0xff]
    %v37 = vld [vmem:[%s0 + $0x10] sm:$0xff]
    %v38 = vld [vmem:[%s0 + $0x18] sm:$0xff]
    %v39 = vld [vmem:[#allocation3] sm:$0xff]
    %v40 = vld [vmem:[#allocation3 + $0x8] sm:$0xff]
    %v41 = vld [vmem:[#allocation3 + $0x10] sm:$0xff]
    %v42 = vld [vmem:[#allocation3 + $0x18] sm:$0xff]
    %v43 = vld [vmem:[#allocation3 + $0x20] sm:$0xff]
    %v44 = vld [vmem:[#allocation3 + $0x28] sm:$0xff]
    %v45 = vld [vmem:[#allocation3 + $0x30] sm:$0xff]
    %v46 = vld [vmem:[#allocation3 + $0x38] sm:$0xff]
    %v47 = vld [vmem:[#allocation3 + $0x40] sm:$0xff]
    %v48 = vld [vmem:[#allocation3 + $0x48] sm:$0xff]
    %v49 = vld [vmem:[#allocation3 + $0x50] sm:$0xff]
    %v50 = vld [vmem:[#allocation3 + $0x58] sm:$0xff]
    %v51 = vld [vmem:[#allocation3 + $0x60] sm:$0xff]
    %v52 = vld [vmem:[#allocation3 + $0x68] sm:$0xff]
    %v53 = vld [vmem:[#allocation3 + $0x70] sm:$0xff]
    %v54 = vld [vmem:[#allocation3 + $0x78] sm:$0xff]
    %v55 = vld [vmem:[#allocation3 + $0x80] sm:$0xff]
    %v56 = vld [vmem:[#allocation3 + $0x88] sm:$0xff]
    %v57 = vld [vmem:[#allocation3 + $0x90] sm:$0xff]
    %v58 = vld [vmem:[#allocation3 + $0x98] sm:$0xff]
    %v59 = vld [vmem:[#allocation3 + $0xa0] sm:$0xff]
    %v60 = vld [vmem:[#allocation3 + $0xa8] sm:$0xff]
    %v61 = vld [vmem:[#allocation3 + $0xb0] sm:$0xff]
    %v62 = vld [vmem:[#allocation3 + $0xb8] sm:$0xff]
    %v63 = vld [vmem:[#allocation3 + $0xc0] sm:$0xff]
    %v64 = vld [vmem:[#allocation3 + $0xc8] sm:$0xff]
    %v65 = vld [vmem:[#allocation3 + $0xd0] sm:$0xff]
    %v66 = vld [vmem:[#allocation3 + $0xd8] sm:$0xff]
    %v67 = vld [vmem:[#allocation3 + $0xe0] sm:$0xff]
    %v68 = vld [vmem:[#allocation3 + $0xe8] sm:$0xff]
    %v69 = vld [vmem:[#allocation3 + $0xf0] sm:$0xff]
    %v70 = vld [vmem:[#allocation3 + $0xf8] sm:$0xff]
    %v71 = vld [vmem:[#allocation3 + $0x100] sm:$0xff]
    %v72 = vld [vmem:[#allocation3 + $0x108] sm:$0xff]
    %v73 = vld [vmem:[#allocation3 + $0x110] sm:$0xff]
    %v74 = vld [vmem:[#allocation3 + $0x118] sm:$0xff]
    %v75 = vld [vmem:[#allocation3 + $0x120] sm:$0xff]
    %v76 = vld [vmem:[#allocation3 + $0x128] sm:$0xff]
    %v77 = vld [vmem:[#allocation3 + $0x130] sm:$0xff]
    %v78 = vld [vmem:[#allocation3 + $0x138] sm:$0xff]
    %v79 = vld [vmem:[#allocation3 + $0x140] sm:$0xff]
    %v80 = vld [vmem:[#allocation3 + $0x148] sm:$0xff]
    %v81 = vld [vmem:[#allocation3 + $0x150] sm:$0xff]
    %v82 = vld [vmem:[#allocation3 + $0x158] sm:$0xff]
    %v83 = vld [vmem:[#allocation3 + $0x160] sm:$0xff]
    %v84 = vld [vmem:[#allocation3 + $0x168] sm:$0xff]
    %v85 = vld [vmem:[#allocation3 + $0x170] sm:$0xff]
    %v86 = vld [vmem:[#allocation3 + $0x178] sm:$0xff]
    %v87 = vld [vmem:[#allocation3 + $0x180] sm:$0xff]
    %v88 = vld [vmem:[#allocation3 + $0x188] sm:$0xff]
    %v89 = vld [vmem:[#allocation3 + $0x190] sm:$0xff]
    %v90 = vld [vmem:[#allocation3 + $0x198] sm:$0xff]
    %v91 = vld [vmem:[#allocation3 + $0x1a0] sm:$0xff]
    %v92 = vld [vmem:[#allocation3 + $0x1a8] sm:$0xff]
    %v93 = vld [vmem:[#allocation3 + $0x1b0] sm:$0xff]
    %v94 = vld [vmem:[#allocation3 + $0x1b8] sm:$0xff]
    %v95 = vld [vmem:[#allocation3 + $0x1c0] sm:$0xff]
    %v96 = vld [vmem:[#allocation3 + $0x1c8] sm:$0xff]
    %v97 = vld [vmem:[#allocation3 + $0x1d0] sm:$0xff]
    %v98 = vld [vmem:[#allocation3 + $0x1d8] sm:$0xff]
    %v99 = vld [vmem:[#allocation3 + $0x1e0] sm:$0xff]
    %v100 = vld [vmem:[#allocation3 + $0x1e8] sm:$0xff]
    %v101 = vld [vmem:[#allocation3 + $0x1f0] sm:$0xff]
    %v102 = vld [vmem:[#allocation3 + $0x1f8] sm:$0xff]
    %v103 = vld [vmem:[#allocation3 + $0x200] sm:$0xff]
    %v104 = vld [vmem:[#allocation3 + $0x208] sm:$0xff]
    %v105 = vld [vmem:[#allocation3 + $0x210] sm:$0xff]
    %v106 = vld [vmem:[#allocation3 + $0x218] sm:$0xff]
    %v107 = vld [vmem:[#allocation3 + $0x220] sm:$0xff]
    %v108 = vld [vmem:[#allocation3 + $0x228] sm:$0xff]
    %v109 = vld [vmem:[#allocation3 + $0x230] sm:$0xff]
    %v110 = vld [vmem:[#allocation3 + $0x238] sm:$0xff]
    %v111 = vld [vmem:[#allocation3 + $0x240] sm:$0xff]
    %v112 = vld [vmem:[#allocation3 + $0x248] sm:$0xff]
    %v113 = vld [vmem:[#allocation3 + $0x250] sm:$0xff]
    %v114 = vld [vmem:[#allocation3 + $0x258] sm:$0xff]
    %v115 = vld [vmem:[#allocation3 + $0x260] sm:$0xff]
    %v116 = vld [vmem:[#allocation3 + $0x268] sm:$0xff]
    %v117 = vld [vmem:[#allocation3 + $0x270] sm:$0xff]
    %v118 = vld [vmem:[#allocation3 + $0x278] sm:$0xff]
    %v119 = vld [vmem:[#allocation3 + $0x280] sm:$0xff]
    %v120 = vld [vmem:[#allocation3 + $0x288] sm:$0xff]
    %v121 = vld [vmem:[#allocation3 + $0x290] sm:$0xff]
    %v122 = vld [vmem:[#allocation3 + $0x298] sm:$0xff]
    %v123 = vld [vmem:[#allocation3 + $0x2a0] sm:$0xff]
    %v124 = vld [vmem:[#allocation3 + $0x2a8] sm:$0xff]
    %v125 = vld [vmem:[#allocation3 + $0x2b0] sm:$0xff]
    %v126 = vld [vmem:[#allocation3 + $0x2b8] sm:$0xff]
    %v127 = vld [vmem:[#allocation3 + $0x2c0] sm:$0xff]
    %v128 = vld [vmem:[#allocation3 + $0x2c8] sm:$0xff]
    %v129 = vld [vmem:[#allocation3 + $0x2d0] sm:$0xff]
    %v130 = vld [vmem:[#allocation3 + $0x2d8] sm:$0xff]
    %v131 = vld [vmem:[#allocation3 + $0x2e0] sm:$0xff]
    %v132 = vld [vmem:[#allocation3 + $0x2e8] sm:$0xff]
    %v133 = vld [vmem:[#allocation3 + $0x2f0] sm:$0xff]
    %v134 = vld [vmem:[#allocation3 + $0x2f8] sm:$0xff]
    %v135 = vld [vmem:[#allocation3 + $0x300] sm:$0xff]
    %v136 = vld [vmem:[#allocation3 + $0x308] sm:$0xff]
    %v137 = vld [vmem:[#allocation3 + $0x310] sm:$0xff]
    %v138 = vld [vmem:[#allocation3 + $0x318] sm:$0xff]
    %v139 = vld [vmem:[#allocation3 + $0x320] sm:$0xff]
    %v140 = vld [vmem:[#allocation3 + $0x328] sm:$0xff]
    %v141 = vld [vmem:[#allocation3 + $0x330] sm:$0xff]
    %v142 = vld [vmem:[#allocation3 + $0x338] sm:$0xff]
    %v143 = vld [vmem:[#allocation3 + $0x340] sm:$0xff]
    %v144 = vld [vmem:[#allocation3 + $0x348] sm:$0xff]
    %v145 = vld [vmem:[#allocation3 + $0x350] sm:$0xff]
    %v146 = vld [vmem:[#allocation3 + $0x358] sm:$0xff]
    %v147 = vld [vmem:[#allocation3 + $0x360] sm:$0xff]
    %v148 = vld [vmem:[#allocation3 + $0x368] sm:$0xff]
    %v149 = vld [vmem:[#allocation3 + $0x370] sm:$0xff]
    %v150 = vld [vmem:[#allocation3 + $0x378] sm:$0xff]
    %v151 = vld [vmem:[#allocation3 + $0x380] sm:$0xff]
    %v152 = vld [vmem:[#allocation3 + $0x388] sm:$0xff]
    %v153 = vld [vmem:[#allocation3 + $0x390] sm:$0xff]
    %v154 = vld [vmem:[#allocation3 + $0x398] sm:$0xff]
    %v155 = vld [vmem:[#allocation3 + $0x3a0] sm:$0xff]
    %v156 = vld [vmem:[#allocation3 + $0x3a8] sm:$0xff]
    %v157 = vld [vmem:[#allocation3 + $0x3b0] sm:$0xff]
    %v158 = vld [vmem:[#allocation3 + $0x3b8] sm:$0xff]
    %v159 = vld [vmem:[#allocation3 + $0x3c0] sm:$0xff]
    %v160 = vld [vmem:[#allocation3 + $0x3c8] sm:$0xff]
    %v161 = vld [vmem:[#allocation3 + $0x3d0] sm:$0xff]
    %v162 = vld [vmem:[#allocation3 + $0x3d8] sm:$0xff]
    %v163 = vld [vmem:[#allocation3 + $0x3e0] sm:$0xff]
    %v164 = vld [vmem:[#allocation3 + $0x3e8] sm:$0xff]
    %v165 = vld [vmem:[#allocation3 + $0x3f0] sm:$0xff]
    %v166 = vld [vmem:[#allocation3 + $0x3f8] sm:$0xff]
    %v167 = vld [vmem:[#allocation3 + $0x400] sm:$0xff]
    %v168 = vld [vmem:[#allocation3 + $0x408] sm:$0xff]
    %v169 = vld [vmem:[#allocation3 + $0x410] sm:$0xff]
    %v170 = vld [vmem:[#allocation3 + $0x418] sm:$0xff]
    %v171 = vld [vmem:[#allocation3 + $0x420] sm:$0xff]
    %v172 = vld [vmem:[#allocation3 + $0x428] sm:$0xff]
    %v173 = vld [vmem:[#allocation3 + $0x430] sm:$0xff]
    %v174 = vld [vmem:[#allocation3 + $0x438] sm:$0xff]
    %v175 = vld [vmem:[#allocation3 + $0x440] sm:$0xff]
    %v176 = vld [vmem:[#allocation3 + $0x448] sm:$0xff]
    %v177 = vld [vmem:[#allocation3 + $0x450] sm:$0xff]
    %v178 = vld [vmem:[#allocation3 + $0x458] sm:$0xff]
    %v179 = vld [vmem:[#allocation3 + $0x460] sm:$0xff]
    %v180 = vld [vmem:[#allocation3 + $0x468] sm:$0xff]
    %v181 = vld [vmem:[#allocation3 + $0x470] sm:$0xff]
    %v182 = vld [vmem:[#allocation3 + $0x478] sm:$0xff]
    %v183 = vld [vmem:[#allocation3 + $0x480] sm:$0xff]
    %v184 = vld [vmem:[#allocation3 + $0x488] sm:$0xff]
    %v185 = vld [vmem:[#allocation3 + $0x490] sm:$0xff]
    %v186 = vld [vmem:[#allocation3 + $0x498] sm:$0xff]
    %v187 = vld [vmem:[#allocation3 + $0x4a0] sm:$0xff]
    %v188 = vld [vmem:[#allocation3 + $0x4a8] sm:$0xff]
    %v189 = vld [vmem:[#allocation3 + $0x4b0] sm:$0xff]
    %v190 = vld [vmem:[#allocation3 + $0x4b8] sm:$0xff]
    %v191 = vld [vmem:[#allocation3 + $0x4c0] sm:$0xff]
    %v192 = vld [vmem:[#allocation3 + $0x4c8] sm:$0xff]
    %v193 = vld [vmem:[#allocation3 + $0x4d0] sm:$0xff]
    %v194 = vld [vmem:[#allocation3 + $0x4d8] sm:$0xff]
    %v195 = vld [vmem:[#allocation3 + $0x4e0] sm:$0xff]
    %v196 = vld [vmem:[#allocation3 + $0x4e8] sm:$0xff]
    %v197 = vld [vmem:[#allocation3 + $0x4f0] sm:$0xff]
    %v198 = vld [vmem:[#allocation3 + $0x4f8] sm:$0xff]
    %v199 = vld [vmem:[#allocation3 + $0x500] sm:$0xff]
    %v200 = vld [vmem:[#allocation3 + $0x508] sm:$0xff]
    %v201 = vld [vmem:[#allocation3 + $0x510] sm:$0xff]
    %v202 = vld [vmem:[#allocation3 + $0x518] sm:$0xff]
    %v203 = vld [vmem:[#allocation3 + $0x520] sm:$0xff]
    %v204 = vld [vmem:[#allocation3 + $0x528] sm:$0xff]
    %v205 = vld [vmem:[#allocation3 + $0x530] sm:$0xff]
    %v206 = vld [vmem:[#allocation3 + $0x538] sm:$0xff]
    %v207 = vld [vmem:[#allocation3 + $0x540] sm:$0xff]
    %v208 = vld [vmem:[#allocation3 + $0x548] sm:$0xff]
    %v209 = vld [vmem:[#allocation3 + $0x550] sm:$0xff]
    %v210 = vld [vmem:[#allocation3 + $0x558] sm:$0xff]
    %v211 = vld [vmem:[#allocation3 + $0x560] sm:$0xff]
    %v212 = vld [vmem:[#allocation3 + $0x568] sm:$0xff]
    %v213 = vld [vmem:[#allocation3 + $0x570] sm:$0xff]
    %v214 = vld [vmem:[#allocation3 + $0x578] sm:$0xff]
    %v215 = vld [vmem:[#allocation3 + $0x580] sm:$0xff]
    %v216 = vld [vmem:[#allocation3 + $0x588] sm:$0xff]
    %v217 = vld [vmem:[#allocation3 + $0x590] sm:$0xff]
    %v218 = vld [vmem:[#allocation3 + $0x598] sm:$0xff]
    %v219 = vld [vmem:[#allocation3 + $0x5a0] sm:$0xff]
    %v220 = vld [vmem:[#allocation3 + $0x5a8] sm:$0xff]
    %v221 = vld [vmem:[#allocation3 + $0x5b0] sm:$0xff]
    %v222 = vld [vmem:[#allocation3 + $0x5b8] sm:$0xff]
    %v223 = vld [vmem:[#allocation3 + $0x5c0] sm:$0xff]
    %v224 = vld [vmem:[#allocation3 + $0x5c8] sm:$0xff]
    %v225 = vld [vmem:[#allocation3 + $0x5d0] sm:$0xff]
    %v226 = vld [vmem:[#allocation3 + $0x5d8] sm:$0xff]
    %v227 = vld [vmem:[#allocation3 + $0x5e0] sm:$0xff]
    %v228 = vld [vmem:[#allocation3 + $0x5e8] sm:$0xff]
    %v229 = vld [vmem:[#allocation3 + $0x5f0] sm:$0xff]
    %v230 = vld [vmem:[#allocation3 + $0x5f8] sm:$0xff]
    %v231 = vld [vmem:[#allocation3 + $0x600] sm:$0xff]
    %v232 = vld [vmem:[#allocation3 + $0x608] sm:$0xff]
    %v233 = vld [vmem:[#allocation3 + $0x610] sm:$0xff]
    %v234 = vld [vmem:[#allocation3 + $0x618] sm:$0xff]
    %v235 = vld [vmem:[#allocation3 + $0x620] sm:$0xff]
    %v236 = vld [vmem:[#allocation3 + $0x628] sm:$0xff]
    %v237 = vld [vmem:[#allocation3 + $0x630] sm:$0xff]
    %v238 = vld [vmem:[#allocation3 + $0x638] sm:$0xff]
    %v239 = vld [vmem:[#allocation3 + $0x640] sm:$0xff]
    %v240 = vld [vmem:[#allocation3 + $0x648] sm:$0xff]
    %v241 = vld [vmem:[#allocation3 + $0x650] sm:$0xff]
    %v242 = vld [vmem:[#allocation3 + $0x658] sm:$0xff]
    %v243 = vld [vmem:[#allocation3 + $0x660] sm:$0xff]
    %v244 = vld [vmem:[#allocation3 + $0x668] sm:$0xff]
    %v245 = vld [vmem:[#allocation3 + $0x670] sm:$0xff]
    %v246 = vld [vmem:[#allocation3 + $0x678] sm:$0xff]
    %v247 = vld [vmem:[#allocation3 + $0x680] sm:$0xff]
    %v248 = vld [vmem:[#allocation3 + $0x688] sm:$0xff]
    %v249 = vld [vmem:[#allocation3 + $0x690] sm:$0xff]
    %v250 = vld [vmem:[#allocation3 + $0x698] sm:$0xff]
    %v251 = vld [vmem:[#allocation3 + $0x6a0] sm:$0xff]
    %v252 = vld [vmem:[#allocation3 + $0x6a8] sm:$0xff]
    %v253 = vld [vmem:[#allocation3 + $0x6b0] sm:$0xff]
    %v254 = vld [vmem:[#allocation3 + $0x6b8] sm:$0xff]
    %v255 = vld [vmem:[#allocation3 + $0x6c0] sm:$0xff]
    %v256 = vld [vmem:[#allocation3 + $0x6c8] sm:$0xff]
    %v257 = vld [vmem:[#allocation3 + $0x6d0] sm:$0xff]
    %v258 = vld [vmem:[#allocation3 + $0x6d8] sm:$0xff]
    %v259 = vld [vmem:[#allocation3 + $0x6e0] sm:$0xff]
    %v260 = vld [vmem:[#allocation3 + $0x6e8] sm:$0xff]
    %v261 = vld [vmem:[#allocation3 + $0x6f0] sm:$0xff]
    %v262 = vld [vmem:[#allocation3 + $0x6f8] sm:$0xff]
    %v263 = vld [vmem:[#allocation3 + $0x700] sm:$0xff]
    %v264 = vld [vmem:[#allocation3 + $0x708] sm:$0xff]
    %v265 = vld [vmem:[#allocation3 + $0x710] sm:$0xff]
    %v266 = vld [vmem:[#allocation3 + $0x718] sm:$0xff]
    %v267 = vld [vmem:[#allocation3 + $0x720] sm:$0xff]
    %v268 = vld [vmem:[#allocation3 + $0x728] sm:$0xff]
    %v269 = vld [vmem:[#allocation3 + $0x730] sm:$0xff]
    %v270 = vld [vmem:[#allocation3 + $0x738] sm:$0xff]
    %v271 = vld [vmem:[#allocation3 + $0x740] sm:$0xff]
    %v272 = vld [vmem:[#allocation3 + $0x748] sm:$0xff]
    %v273 = vld [vmem:[#allocation3 + $0x750] sm:$0xff]
    %v274 = vld [vmem:[#allocation3 + $0x758] sm:$0xff]
    %v275 = vld [vmem:[#allocation3 + $0x760] sm:$0xff]
    %v276 = vld [vmem:[#allocation3 + $0x768] sm:$0xff]
    %v277 = vld [vmem:[#allocation3 + $0x770] sm:$0xff]
    %v278 = vld [vmem:[#allocation3 + $0x778] sm:$0xff]
    %v279 = vld [vmem:[#allocation3 + $0x780] sm:$0xff]
    %v280 = vld [vmem:[#allocation3 + $0x788] sm:$0xff]
    %v281 = vld [vmem:[#allocation3 + $0x790] sm:$0xff]
    %v282 = vld [vmem:[#allocation3 + $0x798] sm:$0xff]
    %v283 = vld [vmem:[#allocation3 + $0x7a0] sm:$0xff]
    %v284 = vld [vmem:[#allocation3 + $0x7a8] sm:$0xff]
    %v285 = vld [vmem:[#allocation3 + $0x7b0] sm:$0xff]
    %v286 = vld [vmem:[#allocation3 + $0x7b8] sm:$0xff]
    %v287 = vld [vmem:[#allocation3 + $0x7c0] sm:$0xf]
    %v288 = vld [vmem:[#allocation3 + $0x7c8] sm:$0xf]
    %v289 = vld [vmem:[#allocation3 + $0x7d0] sm:$0xf]
    %v290 = vld [vmem:[#allocation3 + $0x7d8] sm:$0xf]
    %v291 = vld [vmem:[%s2] sm:$0xf]
    %v293 = vlaneseq
    %v294 = vshrl.u32 %v293, 7
    %v295 = vsub.s32 0, %v294
    %v296 = vrot.slane %v291, %v295
    %v297 = vlaneseq
    %v298 = vshrl.u32 %v297, 7
    %v299 = vsub.s32 1, %v298
    %v300 = vrot.slane %v291, %v299
    %v301 = vlaneseq
    %v302 = vshrl.u32 %v301, 7
    %v303 = vsub.s32 2, %v302
    %v304 = vrot.slane %v291, %v303
    %v305 = vlaneseq
    %v306 = vshrl.u32 %v305, 7
    %v307 = vsub.s32 3, %v306
    %v308 = vrot.slane %v291, %v307
    %vm313 = vcmask 949248
    %v315 = vsel %vm313, %v38, 0
    %vm317 = vcmask 1043456
    %v319 = vsel %vm317, %v287, 0
    %v322 = vsel %vm317, %v288, 0
    %v325 = vsel %vm317, %v289, 0
    %v328 = vsel %vm317, %v290, 0
    %330 = vmatprep.subr.mxu0 %v100
    %331 = vmatpush1.msra.mxu0 %v99
    %332 = vmatprep.subr.mxu0 %v96
    %333 = vmatpush1.msra.mxu0 %v95
    %334 = vmatprep.subr.mxu0 %v92
    %335 = vmatpush1.msra.mxu0 %v91
    %336 = vmatprep.subr.mxu0 %v88
    %337 = vmatpush1.msra.mxu0 %v87
    %338 = vmatprep.subr.mxu0 %v84
    %339 = vmatpush1.msra.mxu0 %v83
    %340 = vmatprep.subr.mxu0 %v80
    %341 = vmatpush1.msra.mxu0 %v79
    %342 = vmatprep.subr.mxu0 %v76
    %343 = vmatpush1.msra.mxu0 %v75
    %344 = vmatprep.subr.mxu0 %v72
    %345 = vmatpush1.msra.mxu0 %v71
    %346 = vmatprep.subr.mxu0 %v68
    %347 = vmatpush1.msra.mxu0 %v67
    %348 = vmatprep.subr.mxu0 %v64
    %349 = vmatpush1.msra.mxu0 %v63
    %350 = vmatprep.subr.mxu0 %v60
    %351 = vmatpush1.msra.mxu0 %v59
    %352 = vmatprep.subr.mxu0 %v56
    %353 = vmatpush1.msra.mxu0 %v55
    %354 = vmatprep.subr.mxu0 %v52
    %355 = vmatpush1.msra.mxu0 %v51
    %356 = vmatprep.subr.mxu0 %v48
    %357 = vmatpush1.msra.mxu0 %v47
    %358 = vmatprep.subr.mxu0 %v44
    %359 = vmatpush1.msra.mxu0 %v43
    %360 = vmatprep.subr.mxu0 %v40
    %361 = vmatpush1.msra.mxu0 %v39
    %362 = vmatprep.subr.mxu0 %v164
    %363 = vmatpush2.msra.mxu0 %v163
    %364 = vmatprep.subr.mxu0 %v160
    %365 = vmatpush2.msra.mxu0 %v159
    %366 = vmatprep.subr.mxu0 %v156
    %367 = vmatpush2.msra.mxu0 %v155
    %368 = vmatprep.subr.mxu0 %v152
    %369 = vmatpush2.msra.mxu0 %v151
    %370 = vmatprep.subr.mxu0 %v148
    %371 = vmatpush2.msra.mxu0 %v147
    %372 = vmatprep.subr.mxu0 %v144
    %373 = vmatpush2.msra.mxu0 %v143
    %374 = vmatprep.subr.mxu0 %v140
    %375 = vmatpush2.msra.mxu0 %v139
    %376 = vmatprep.subr.mxu0 %v136
    %377 = vmatpush2.msra.mxu0 %v135
    %378 = vmatprep.subr.mxu0 %v132
    %379 = vmatpush2.msra.mxu0 %v131
    %380 = vmatprep.subr.mxu0 %v128
    %381 = vmatpush2.msra.mxu0 %v127
    %382 = vmatprep.subr.mxu0 %v124
    %383 = vmatpush2.msra.mxu0 %v123
    %384 = vmatprep.subr.mxu0 %v120
    %385 = vmatpush2.msra.mxu0 %v119
    %386 = vmatprep.subr.mxu0 %v116
    %387 = vmatpush2.msra.mxu0 %v115
    %388 = vmatprep.subr.mxu0 %v112
    %389 = vmatpush2.msra.mxu0 %v111
    %390 = vmatprep.subr.mxu0 %v108
    %391 = vmatpush2.msra.mxu0 %v107
    %392 = vmatprep.subr.mxu0 %v104
    %393 = vmatpush2.msra.mxu0 %v103
    %394 = vmatprep.mubr.f32.mxu0 %v36
    %395 = vmatmul.mubr.f32.gmra.mxu0 %v35
    %v396 = vpop.f32.mrf.mxu0
    %v397 = vadd.f32 %v296, %v396
    %v398 = vpop.f32.mrf.mxu0
    %v399 = vadd.f32 %v300, %v398
    %400 = vdwg.mxu0
    %401 = vmatprep.subr.mxu0 %v228
    %402 = vmatpush1.msra.mxu0 %v227
    %403 = vmatprep.subr.mxu0 %v224
    %404 = vmatpush1.msra.mxu0 %v223
    %405 = vmatprep.subr.mxu0 %v220
    %406 = vmatpush1.msra.mxu0 %v219
    %407 = vmatprep.subr.mxu0 %v216
    %408 = vmatpush1.msra.mxu0 %v215
    %409 = vmatprep.subr.mxu0 %v212
    %410 = vmatpush1.msra.mxu0 %v211
    %411 = vmatprep.subr.mxu0 %v208
    %412 = vmatpush1.msra.mxu0 %v207
    %413 = vmatprep.subr.mxu0 %v204
    %414 = vmatpush1.msra.mxu0 %v203
    %415 = vmatprep.subr.mxu0 %v200
    %416 = vmatpush1.msra.mxu0 %v199
    %417 = vmatprep.subr.mxu0 %v196
    %418 = vmatpush1.msra.mxu0 %v195
    %419 = vmatprep.subr.mxu0 %v192
    %420 = vmatpush1.msra.mxu0 %v191
    %421 = vmatprep.subr.mxu0 %v188
    %422 = vmatpush1.msra.mxu0 %v187
    %423 = vmatprep.subr.mxu0 %v184
    %424 = vmatpush1.msra.mxu0 %v183
    %425 = vmatprep.subr.mxu0 %v180
    %426 = vmatpush1.msra.mxu0 %v179
    %427 = vmatprep.subr.mxu0 %v176
    %428 = vmatpush1.msra.mxu0 %v175
    %429 = vmatprep.subr.mxu0 %v172
    %430 = vmatpush1.msra.mxu0 %v171
    %431 = vmatprep.subr.mxu0 %v168
    %432 = vmatpush1.msra.mxu0 %v167
    %433 = vmatprep.subr.mxu0 0.0
    %434 = vmatpush2.msra.mxu0 0.0
    %435 = vmatprep.subr.mxu0 %v322
    %436 = vmatpush2.msra.mxu0 %v319
    %437 = vmatprep.subr.mxu0 %v284
    %438 = vmatpush2.msra.mxu0 %v283
    %439 = vmatprep.subr.mxu0 %v280
    %440 = vmatpush2.msra.mxu0 %v279
    %441 = vmatprep.subr.mxu0 %v276
    %442 = vmatpush2.msra.mxu0 %v275
    %443 = vmatprep.subr.mxu0 %v272
    %444 = vmatpush2.msra.mxu0 %v271
    %445 = vmatprep.subr.mxu0 %v268
    %446 = vmatpush2.msra.mxu0 %v267
    %447 = vmatprep.subr.mxu0 %v264
    %448 = vmatpush2.msra.mxu0 %v263
    %449 = vmatprep.subr.mxu0 %v260
    %450 = vmatpush2.msra.mxu0 %v259
    %451 = vmatprep.subr.mxu0 %v256
    %452 = vmatpush2.msra.mxu0 %v255
    %453 = vmatprep.subr.mxu0 %v252
    %454 = vmatpush2.msra.mxu0 %v251
    %455 = vmatprep.subr.mxu0 %v248
    %456 = vmatpush2.msra.mxu0 %v247
    %457 = vmatprep.subr.mxu0 %v244
    %458 = vmatpush2.msra.mxu0 %v243
    %459 = vmatprep.subr.mxu0 %v240
    %460 = vmatpush2.msra.mxu0 %v239
    %461 = vmatprep.subr.mxu0 %v236
    %462 = vmatpush2.msra.mxu0 %v235
    %463 = vmatprep.subr.mxu0 %v232
    %464 = vmatpush2.msra.mxu0 %v231
    %465 = vmatprep.mubr.f32.mxu0 %v315
    %466 = vmatmul.mubr.f32.gmra.mxu0 %v37
    %v467 = vpop.f32.mrf.mxu0
    %v468 = vadd.f32 %v397, %v467
    %v469 = vpop.f32.mrf.mxu0
    %v470 = vadd.f32 %v399, %v469
    %471 = vdwg.mxu0
    %472 = vmatprep.subr.mxu0 %v102
    %473 = vmatpush1.msra.mxu0 %v101
    %474 = vmatprep.subr.mxu0 %v98
    %475 = vmatpush1.msra.mxu0 %v97
    %476 = vmatprep.subr.mxu0 %v94
    %477 = vmatpush1.msra.mxu0 %v93
    %478 = vmatprep.subr.mxu0 %v90
    %479 = vmatpush1.msra.mxu0 %v89
    %480 = vmatprep.subr.mxu0 %v86
    %481 = vmatpush1.msra.mxu0 %v85
    %482 = vmatprep.subr.mxu0 %v82
    %483 = vmatpush1.msra.mxu0 %v81
    %484 = vmatprep.subr.mxu0 %v78
    %485 = vmatpush1.msra.mxu0 %v77
    %486 = vmatprep.subr.mxu0 %v74
    %487 = vmatpush1.msra.mxu0 %v73
    %488 = vmatprep.subr.mxu0 %v70
    %489 = vmatpush1.msra.mxu0 %v69
    %490 = vmatprep.subr.mxu0 %v66
    %491 = vmatpush1.msra.mxu0 %v65
    %492 = vmatprep.subr.mxu0 %v62
    %493 = vmatpush1.msra.mxu0 %v61
    %494 = vmatprep.subr.mxu0 %v58
    %495 = vmatpush1.msra.mxu0 %v57
    %496 = vmatprep.subr.mxu0 %v54
    %497 = vmatpush1.msra.mxu0 %v53
    %498 = vmatprep.subr.mxu0 %v50
    %499 = vmatpush1.msra.mxu0 %v49
    %500 = vmatprep.subr.mxu0 %v46
    %501 = vmatpush1.msra.mxu0 %v45
    %502 = vmatprep.subr.mxu0 %v42
    %503 = vmatpush1.msra.mxu0 %v41
    %504 = vmatprep.subr.mxu0 %v166
    %505 = vmatpush2.msra.mxu0 %v165
    %506 = vmatprep.subr.mxu0 %v162
    %507 = vmatpush2.msra.mxu0 %v161
    %508 = vmatprep.subr.mxu0 %v158
    %509 = vmatpush2.msra.mxu0 %v157
    %510 = vmatprep.subr.mxu0 %v154
    %511 = vmatpush2.msra.mxu0 %v153
    %512 = vmatprep.subr.mxu0 %v150
    %513 = vmatpush2.msra.mxu0 %v149
    %514 = vmatprep.subr.mxu0 %v146
    %515 = vmatpush2.msra.mxu0 %v145
    %516 = vmatprep.subr.mxu0 %v142
    %517 = vmatpush2.msra.mxu0 %v141
    %518 = vmatprep.subr.mxu0 %v138
    %519 = vmatpush2.msra.mxu0 %v137
    %520 = vmatprep.subr.mxu0 %v134
    %521 = vmatpush2.msra.mxu0 %v133
    %522 = vmatprep.subr.mxu0 %v130
    %523 = vmatpush2.msra.mxu0 %v129
    %524 = vmatprep.subr.mxu0 %v126
    %525 = vmatpush2.msra.mxu0 %v125
    %526 = vmatprep.subr.mxu0 %v122
    %527 = vmatpush2.msra.mxu0 %v121
    %528 = vmatprep.subr.mxu0 %v118
    %529 = vmatpush2.msra.mxu0 %v117
    %530 = vmatprep.subr.mxu0 %v114
    %531 = vmatpush2.msra.mxu0 %v113
    %532 = vmatprep.subr.mxu0 %v110
    %533 = vmatpush2.msra.mxu0 %v109
    %534 = vmatprep.subr.mxu0 %v106
    %535 = vmatpush2.msra.mxu0 %v105
    %536 = vmatprep.mubr.f32.mxu0 %v36
    %537 = vmatmul.mubr.f32.gmra.mxu0 %v35
    %v538 = vpop.f32.mrf.mxu0
    %v539 = vadd.f32 %v304, %v538
    %v540 = vpop.f32.mrf.mxu0
    %v541 = vadd.f32 %v308, %v540
    %542 = vdwg.mxu0
    %543 = vmatprep.subr.mxu0 %v230
    %544 = vmatpush1.msra.mxu0 %v229
    %545 = vmatprep.subr.mxu0 %v226
    %546 = vmatpush1.msra.mxu0 %v225
    %547 = vmatprep.subr.mxu0 %v222
    %548 = vmatpush1.msra.mxu0 %v221
    %549 = vmatprep.subr.mxu0 %v218
    %550 = vmatpush1.msra.mxu0 %v217
    %551 = vmatprep.subr.mxu0 %v214
    %552 = vmatpush1.msra.mxu0 %v213
    %553 = vmatprep.subr.mxu0 %v210
    %554 = vmatpush1.msra.mxu0 %v209
    %555 = vmatprep.subr.mxu0 %v206
    %556 = vmatpush1.msra.mxu0 %v205
    %557 = vmatprep.subr.mxu0 %v202
    %558 = vmatpush1.msra.mxu0 %v201
    %559 = vmatprep.subr.mxu0 %v198
    %560 = vmatpush1.msra.mxu0 %v197
    %561 = vmatprep.subr.mxu0 %v194
    %562 = vmatpush1.msra.mxu0 %v193
    %563 = vmatprep.subr.mxu0 %v190
    %564 = vmatpush1.msra.mxu0 %v189
    %565 = vmatprep.subr.mxu0 %v186
    %566 = vmatpush1.msra.mxu0 %v185
    %567 = vmatprep.subr.mxu0 %v182
    %568 = vmatpush1.msra.mxu0 %v181
    %569 = vmatprep.subr.mxu0 %v178
    %570 = vmatpush1.msra.mxu0 %v177
    %571 = vmatprep.subr.mxu0 %v174
    %572 = vmatpush1.msra.mxu0 %v173
    %573 = vmatprep.subr.mxu0 %v170
    %574 = vmatpush1.msra.mxu0 %v169
    %575 = vmatprep.subr.mxu0 0.0
    %576 = vmatpush2.msra.mxu0 0.0
    %577 = vmatprep.subr.mxu0 %v328
    %578 = vmatpush2.msra.mxu0 %v325
    %579 = vmatprep.subr.mxu0 %v286
    %580 = vmatpush2.msra.mxu0 %v285
    %581 = vmatprep.subr.mxu0 %v282
    %582 = vmatpush2.msra.mxu0 %v281
    %583 = vmatprep.subr.mxu0 %v278
    %584 = vmatpush2.msra.mxu0 %v277
    %585 = vmatprep.subr.mxu0 %v274
    %586 = vmatpush2.msra.mxu0 %v273
    %587 = vmatprep.subr.mxu0 %v270
    %588 = vmatpush2.msra.mxu0 %v269
    %589 = vmatprep.subr.mxu0 %v266
    %590 = vmatpush2.msra.mxu0 %v265
    %591 = vmatprep.subr.mxu0 %v262
    %592 = vmatpush2.msra.mxu0 %v261
    %593 = vmatprep.subr.mxu0 %v258
    %594 = vmatpush2.msra.mxu0 %v257
    %595 = vmatprep.subr.mxu0 %v254
    %596 = vmatpush2.msra.mxu0 %v253
    %597 = vmatprep.subr.mxu0 %v250
    %598 = vmatpush2.msra.mxu0 %v249
    %599 = vmatprep.subr.mxu0 %v246
    %600 = vmatpush2.msra.mxu0 %v245
    %601 = vmatprep.subr.mxu0 %v242
    %602 = vmatpush2.msra.mxu0 %v241
    %603 = vmatprep.subr.mxu0 %v238
    %604 = vmatpush2.msra.mxu0 %v237
    %605 = vmatprep.subr.mxu0 %v234
    %606 = vmatpush2.msra.mxu0 %v233
    %607 = vmatprep.mubr.f32.mxu0 %v315
    %608 = vmatmul.mubr.f32.gmra.mxu0 %v37
    %v609 = vpop.f32.mrf.mxu0
    %v610 = vadd.f32 %v539, %v609
    %v611 = vpop.f32.mrf.mxu0
    %v612 = vadd.f32 %v541, %v611
    %613 = vdwg.mxu0
    %v614 = vtanh.pop %v468
    %v615 = vtanh.pop %v470
    %v616 = vtanh.pop %v610
    %v617 = vtanh.pop %v612
    %v618 = vld [vmem:[%s3] sm:$0xff]
    %v619 = vld [vmem:[%s3 + $0x8] sm:$0xff]
    %v620 = vld [vmem:[%s3 + $0x10] sm:$0xff]
    %v621 = vld [vmem:[%s3 + $0x18] sm:$0xff]
    %v622 = vld [vmem:[%s3 + $0x20] sm:$0xff]
    %v623 = vld [vmem:[%s3 + $0x28] sm:$0xff]
    %v624 = vld [vmem:[%s3 + $0x30] sm:$0xff]
    %v625 = vld [vmem:[%s3 + $0x38] sm:$0xff]
    %v626 = vld [vmem:[%s3 + $0x40] sm:$0xff]
    %v627 = vld [vmem:[%s3 + $0x48] sm:$0xff]
    %v628 = vld [vmem:[%s3 + $0x50] sm:$0xff]
    %v629 = vld [vmem:[%s3 + $0x58] sm:$0xff]
    %v630 = vld [vmem:[%s3 + $0x60] sm:$0xff]
    %v631 = vld [vmem:[%s3 + $0x68] sm:$0xff]
    %v632 = vld [vmem:[%s3 + $0x70] sm:$0xff]
    %v633 = vld [vmem:[%s3 + $0x78] sm:$0xff]
    %v634 = vld [vmem:[%s3 + $0x80] sm:$0xff]
    %v635 = vld [vmem:[%s3 + $0x88] sm:$0xff]
    %v636 = vld [vmem:[%s3 + $0x90] sm:$0xff]
    %v637 = vld [vmem:[%s3 + $0x98] sm:$0xff]
    %v638 = vld [vmem:[%s3 + $0xa0] sm:$0xff]
    %v639 = vld [vmem:[%s3 + $0xa8] sm:$0xff]
    %v640 = vld [vmem:[%s3 + $0xb0] sm:$0xff]
    %v641 = vld [vmem:[%s3 + $0xb8] sm:$0xff]
    %v642 = vld [vmem:[%s3 + $0xc0] sm:$0xff]
    %v643 = vld [vmem:[%s3 + $0xc8] sm:$0xff]
    %v644 = vld [vmem:[%s3 + $0xd0] sm:$0xff]
    %v645 = vld [vmem:[%s3 + $0xd8] sm:$0xff]
    %v646 = vld [vmem:[%s3 + $0xe0] sm:$0xff]
    %v647 = vld [vmem:[%s3 + $0xe8] sm:$0xff]
    %v648 = vld [vmem:[%s3 + $0xf0] sm:$0xff]
    %v649 = vld [vmem:[%s3 + $0xf8] sm:$0xff]
    %v650 = vld [vmem:[%s3 + $0x100] sm:$0xff]
    %v651 = vld [vmem:[%s3 + $0x108] sm:$0xff]
    %v652 = vld [vmem:[%s3 + $0x110] sm:$0xff]
    %v653 = vld [vmem:[%s3 + $0x118] sm:$0xff]
    %v654 = vld [vmem:[%s3 + $0x120] sm:$0xff]
    %v655 = vld [vmem:[%s3 + $0x128] sm:$0xff]
    %v656 = vld [vmem:[%s3 + $0x130] sm:$0xff]
    %v657 = vld [vmem:[%s3 + $0x138] sm:$0xff]
    %v658 = vld [vmem:[%s3 + $0x140] sm:$0xff]
    %v659 = vld [vmem:[%s3 + $0x148] sm:$0xff]
    %v660 = vld [vmem:[%s3 + $0x150] sm:$0xff]
    %v661 = vld [vmem:[%s3 + $0x158] sm:$0xff]
    %v662 = vld [vmem:[%s3 + $0x160] sm:$0xff]
    %v663 = vld [vmem:[%s3 + $0x168] sm:$0xff]
    %v664 = vld [vmem:[%s3 + $0x170] sm:$0xff]
    %v665 = vld [vmem:[%s3 + $0x178] sm:$0xff]
    %v666 = vld [vmem:[%s3 + $0x180] sm:$0xff]
    %v667 = vld [vmem:[%s3 + $0x188] sm:$0xff]
    %v668 = vld [vmem:[%s3 + $0x190] sm:$0xff]
    %v669 = vld [vmem:[%s3 + $0x198] sm:$0xff]
    %v670 = vld [vmem:[%s3 + $0x1a0] sm:$0xff]
    %v671 = vld [vmem:[%s3 + $0x1a8] sm:$0xff]
    %v672 = vld [vmem:[%s3 + $0x1b0] sm:$0xff]
    %v673 = vld [vmem:[%s3 + $0x1b8] sm:$0xff]
    %v674 = vld [vmem:[%s3 + $0x1c0] sm:$0xff]
    %v675 = vld [vmem:[%s3 + $0x1c8] sm:$0xff]
    %v676 = vld [vmem:[%s3 + $0x1d0] sm:$0xff]
    %v677 = vld [vmem:[%s3 + $0x1d8] sm:$0xff]
    %v678 = vld [vmem:[%s3 + $0x1e0] sm:$0xff]
    %v679 = vld [vmem:[%s3 + $0x1e8] sm:$0xff]
    %v680 = vld [vmem:[%s3 + $0x1f0] sm:$0xff]
    %v681 = vld [vmem:[%s3 + $0x1f8] sm:$0xff]
    %s682 = sld [smem:[#allocation2]]
    %v683 = vstv %s682
    %684 = vmatprep.subr.mxu0 0.0
    %685 = vmatpush1.msra.mxu0 %v633
    %686 = vmatprep.subr.mxu0 0.0
    %687 = vmatpush1.msra.mxu0 %v632
    %688 = vmatprep.subr.mxu0 0.0
    %689 = vmatpush1.msra.mxu0 %v631
    %690 = vmatprep.subr.mxu0 0.0
    %691 = vmatpush1.msra.mxu0 %v630
    %692 = vmatprep.subr.mxu0 0.0
    %693 = vmatpush1.msra.mxu0 %v629
    %694 = vmatprep.subr.mxu0 0.0
    %695 = vmatpush1.msra.mxu0 %v628
    %696 = vmatprep.subr.mxu0 0.0
    %697 = vmatpush1.msra.mxu0 %v627
    %698 = vmatprep.subr.mxu0 0.0
    %699 = vmatpush1.msra.mxu0 %v626
    %700 = vmatprep.subr.mxu0 0.0
    %701 = vmatpush1.msra.mxu0 %v625
    %702 = vmatprep.subr.mxu0 0.0
    %703 = vmatpush1.msra.mxu0 %v624
    %704 = vmatprep.subr.mxu0 0.0
    %705 = vmatpush1.msra.mxu0 %v623
    %706 = vmatprep.subr.mxu0 0.0
    %707 = vmatpush1.msra.mxu0 %v622
    %708 = vmatprep.subr.mxu0 0.0
    %709 = vmatpush1.msra.mxu0 %v621
    %710 = vmatprep.subr.mxu0 0.0
    %711 = vmatpush1.msra.mxu0 %v620
    %712 = vmatprep.subr.mxu0 0.0
    %713 = vmatpush1.msra.mxu0 %v619
    %714 = vmatprep.subr.mxu0 0.0
    %715 = vmatpush1.msra.mxu0 %v618
    %716 = vmatprep.subr.mxu0 0.0
    %717 = vmatpush2.msra.mxu0 %v649
    %718 = vmatprep.subr.mxu0 0.0
    %719 = vmatpush2.msra.mxu0 %v648
    %720 = vmatprep.subr.mxu0 0.0
    %721 = vmatpush2.msra.mxu0 %v647
    %722 = vmatprep.subr.mxu0 0.0
    %723 = vmatpush2.msra.mxu0 %v646
    %724 = vmatprep.subr.mxu0 0.0
    %725 = vmatpush2.msra.mxu0 %v645
    %726 = vmatprep.subr.mxu0 0.0
    %727 = vmatpush2.msra.mxu0 %v644
    %728 = vmatprep.subr.mxu0 0.0
    %729 = vmatpush2.msra.mxu0 %v643
    %730 = vmatprep.subr.mxu0 0.0
    %731 = vmatpush2.msra.mxu0 %v642
    %732 = vmatprep.subr.mxu0 0.0
    %733 = vmatpush2.msra.mxu0 %v641
    %734 = vmatprep.subr.mxu0 0.0
    %735 = vmatpush2.msra.mxu0 %v640
    %736 = vmatprep.subr.mxu0 0.0
    %737 = vmatpush2.msra.mxu0 %v639
    %738 = vmatprep.subr.mxu0 0.0
    %739 = vmatpush2.msra.mxu0 %v638
    %740 = vmatprep.subr.mxu0 0.0
    %741 = vmatpush2.msra.mxu0 %v637
    %742 = vmatprep.subr.mxu0 0.0
    %743 = vmatpush2.msra.mxu0 %v636
    %744 = vmatprep.subr.mxu0 0.0
    %745 = vmatpush2.msra.mxu0 %v635
    %746 = vmatprep.subr.mxu0 0.0
    %747 = vmatpush2.msra.mxu0 %v634
    %748 = vmatprep.mubr.f32.mxu0 %v615
    %749 = vmatmul.mubr.f32.gmra.mxu0 %v614
    %v750 = vpop.f32.mrf.mxu0
    %v751 = vadd.f32 %v683, %v750
    %v752 = vpop.f32.mrf.mxu0
    %753 = vdwg.mxu0
    %754 = vmatprep.subr.mxu0 0.0
    %755 = vmatpush1.msra.mxu0 %v665
    %756 = vmatprep.subr.mxu0 0.0
    %757 = vmatpush1.msra.mxu0 %v664
    %758 = vmatprep.subr.mxu0 0.0
    %759 = vmatpush1.msra.mxu0 %v663
    %760 = vmatprep.subr.mxu0 0.0
    %761 = vmatpush1.msra.mxu0 %v662
    %762 = vmatprep.subr.mxu0 0.0
    %763 = vmatpush1.msra.mxu0 %v661
    %764 = vmatprep.subr.mxu0 0.0
    %765 = vmatpush1.msra.mxu0 %v660
    %766 = vmatprep.subr.mxu0 0.0
    %767 = vmatpush1.msra.mxu0 %v659
    %768 = vmatprep.subr.mxu0 0.0
    %769 = vmatpush1.msra.mxu0 %v658
    %770 = vmatprep.subr.mxu0 0.0
    %771 = vmatpush1.msra.mxu0 %v657
    %772 = vmatprep.subr.mxu0 0.0
    %773 = vmatpush1.msra.mxu0 %v656
    %774 = vmatprep.subr.mxu0 0.0
    %775 = vmatpush1.msra.mxu0 %v655
    %776 = vmatprep.subr.mxu0 0.0
    %777 = vmatpush1.msra.mxu0 %v654
    %778 = vmatprep.subr.mxu0 0.0
    %779 = vmatpush1.msra.mxu0 %v653
    %780 = vmatprep.subr.mxu0 0.0
    %781 = vmatpush1.msra.mxu0 %v652
    %782 = vmatprep.subr.mxu0 0.0
    %783 = vmatpush1.msra.mxu0 %v651
    %784 = vmatprep.subr.mxu0 0.0
    %785 = vmatpush1.msra.mxu0 %v650
    %786 = vmatprep.subr.mxu0 0.0
    %787 = vmatpush2.msra.mxu0 %v681
    %788 = vmatprep.subr.mxu0 0.0
    %789 = vmatpush2.msra.mxu0 %v680
    %790 = vmatprep.subr.mxu0 0.0
    %791 = vmatpush2.msra.mxu0 %v679
    %792 = vmatprep.subr.mxu0 0.0
    %793 = vmatpush2.msra.mxu0 %v678
    %794 = vmatprep.subr.mxu0 0.0
    %795 = vmatpush2.msra.mxu0 %v677
    %796 = vmatprep.subr.mxu0 0.0
    %797 = vmatpush2.msra.mxu0 %v676
    %798 = vmatprep.subr.mxu0 0.0
    %799 = vmatpush2.msra.mxu0 %v675
    %800 = vmatprep.subr.mxu0 0.0
    %801 = vmatpush2.msra.mxu0 %v674
    %802 = vmatprep.subr.mxu0 0.0
    %803 = vmatpush2.msra.mxu0 %v673
    %804 = vmatprep.subr.mxu0 0.0
    %805 = vmatpush2.msra.mxu0 %v672
    %806 = vmatprep.subr.mxu0 0.0
    %807 = vmatpush2.msra.mxu0 %v671
    %808 = vmatprep.subr.mxu0 0.0
    %809 = vmatpush2.msra.mxu0 %v670
    %810 = vmatprep.subr.mxu0 0.0
    %811 = vmatpush2.msra.mxu0 %v669
    %812 = vmatprep.subr.mxu0 0.0
    %813 = vmatpush2.msra.mxu0 %v668
    %814 = vmatprep.subr.mxu0 0.0
    %815 = vmatpush2.msra.mxu0 %v667
    %816 = vmatprep.subr.mxu0 0.0
    %817 = vmatpush2.msra.mxu0 %v666
    %818 = vmatprep.mubr.f32.mxu0 %v617
    %819 = vmatmul.mubr.f32.gmra.mxu0 %v616
    %v820 = vpop.f32.mrf.mxu0
    %v821 = vadd.f32 %v751, %v820
    %v822 = vpop.f32.mrf.mxu0
    %823 = vdwg.mxu0
    %v824 = vxor.u32 %v821, 2147483648
    %v825 = vmul.f32 %v824, 1.442695
    %v826 = vpow.pop %v825
    %v827 = vadd.f32 %v826, 1.0
    %v828 = vrcp.pop %v827
    %v829 = vmul.f32 1.0, %v828
    %vm830 = vcmask 7168
    %831 = vst.msk [vmem:[%s5] sm:$0xff] %vm830, %v829
    // Predicated region
    $region26: #{tpu_custom_call.1} parent=1 // pred_check
      _
    $region27: #{tpu_custom_call.1} parent=1 // pred_check_branch
      %833 = sbr.rel (0) target = $region29
    $region28: #{tpu_custom_call.1} parent=1 // pred_region
      _
    $region29: #{tpu_custom_call.1} parent=1 // pred_fallthru
      _
    // Predicated region
    $region30: #{tpu_custom_call.1} parent=1 // pred_check
      _
    $region31: #{tpu_custom_call.1} parent=1 // pred_check_branch
      %835 = sbr.rel (0) target = $region33
    $region32: #{tpu_custom_call.1} parent=1 // pred_region
      _
    $region33: #{tpu_custom_call.1} parent=1 // pred_fallthru
      _
    %836 = vsyncpa [#allocation4], 1

</llo_original>
